<compile_context>
chip_gen: v7x
topology: tpu7x:2x2x1
jax: 0.10.0
libtpu: 0.0.40
codegen_flags: <defaults>
</compile_context>

<pallas_src>
import functools

import numpy as np
import jax
import jax.numpy as jnp
from jax.experimental import pallas as pl
from jax.experimental.pallas import tpu as pltpu

SMEM = pltpu.MemorySpace.SMEM


# ----------------------------------------------------------------------------
# small pose / intrinsics helpers (plain JAX glue, tiny 3x3 / 4x4 algebra)
# ----------------------------------------------------------------------------
def rot_from_axisangle(vec):
    # vec: (B, 1, 3)
    angle = jnp.linalg.norm(vec, axis=2, keepdims=True)          # (B,1,1)
    axis = vec / (angle + 1e-7)
    ca = jnp.cos(angle)
    sa = jnp.sin(angle)
    C = 1.0 - ca
    x = axis[..., 0:1]
    y = axis[..., 1:2]
    z = axis[..., 2:3]
    xs, ys, zs = x * sa, y * sa, z * sa
    xC, yC, zC = x * C, y * C, z * C
    xyC, yzC, zxC = x * yC, y * zC, z * xC
    B = vec.shape[0]

    def s(v):
        return jnp.squeeze(v, axis=(1, 2))

    rot = jnp.zeros((B, 4, 4), jnp.float32)
    rot = rot.at[:, 0, 0].set(s(x * xC + ca))
    rot = rot.at[:, 0, 1].set(s(xyC - zs))
    rot = rot.at[:, 0, 2].set(s(zxC + ys))
    rot = rot.at[:, 1, 0].set(s(xyC + zs))
    rot = rot.at[:, 1, 1].set(s(y * yC + ca))
    rot = rot.at[:, 1, 2].set(s(yzC - xs))
    rot = rot.at[:, 2, 0].set(s(zxC - ys))
    rot = rot.at[:, 2, 1].set(s(yzC + xs))
    rot = rot.at[:, 2, 2].set(s(z * zC + ca))
    rot = rot.at[:, 3, 3].set(1.0)
    return rot


def get_translation_matrix(translation_vector):
    # translation_vector: (B, 1, 3)
    B = translation_vector.shape[0]
    t = translation_vector.reshape(B, 3)
    T = jnp.zeros((B, 4, 4), jnp.float32)
    T = T.at[:, 0, 0].set(1.0).at[:, 1, 1].set(1.0).at[:, 2, 2].set(1.0).at[:, 3, 3].set(1.0)
    T = T.at[:, :3, 3].set(t)
    return T


def transformation_from_parameters(axisangle, translation, invert=False):
    R = rot_from_axisangle(axisangle)
    t = translation
    if invert:
        R = jnp.swapaxes(R, 1, 2)
        t = -t
    T = get_translation_matrix(t)
    return R @ T if invert else T @ R


def generate_pix_coords(height, width):
    mg = np.meshgrid(range(width), range(height), indexing='xy')
    ids = np.stack(mg, axis=0).astype(np.float32)                 # (2,H,W)
    pix = np.stack([ids[0].reshape(-1), ids[1].reshape(-1)], 0)   # (2,HW)
    pix = np.concatenate([pix, np.ones((1, height * width), np.float32)], 0)
    return pix.astype(np.float32)                                 # (3,HW)


# ----------------------------------------------------------------------------
# common tiling helpers
# ----------------------------------------------------------------------------
def _pick_band(H, bytes_per_row, target_bytes=4 << 20):
    """Largest multiple-of-8 divisor of H whose band fits the VMEM target."""
    if H < 8 or H % 8 != 0:
        return H
    cands = [b for b in range(8, H + 1, 8) if H % b == 0]
    fitting = [b for b in cands if b * bytes_per_row <= target_bytes]
    return max(fitting) if fitting else min(cands)


def _mosaic_params(semantics, block_bytes):
    # Explicit VMEM budget per pallas_call: double/triple-buffered blocks plus
    # slack for in-kernel temporaries, capped below the smallest physical VMEM
    # per core across generations (v7x: 64 MiB).
    vmem = int(3 * block_bytes) + (8 << 20)
    vmem = max(12 << 20, min(vmem, 60 << 20))
    return pltpu.CompilerParams(dimension_semantics=semantics,
                                vmem_limit_bytes=vmem)


# ----------------------------------------------------------------------------
# Pallas kernel 1 (fused): MVS 3D loss + back-project/project_3d grid
#   grid = (B, n_row_bands), both axes "parallel"
#   shares pix_img, depth_src, the invK back-projection and the 3D cloud
# ----------------------------------------------------------------------------
def _geom_kernel(pix_ref, dsrc_ref, dtgt_ref, invk_ref, pose_ref, P_ref,
                 mvs_ref, grid_ref):
    b = pl.program_id(0)
    px0 = pix_ref[0]
    px1 = pix_ref[1]
    px2 = pix_ref[2]                                              # (band, W)
    cam = [invk_ref[b, 3 * i + 0] * px0
           + invk_ref[b, 3 * i + 1] * px1
           + invk_ref[b, 3 * i + 2] * px2 for i in range(3)]
    ds = dsrc_ref[0]
    dt = dtgt_ref[0]
    cs = [ds * cam[0], ds * cam[1], ds * cam[2]]
    ct = [dt * cam[0], dt * cam[1], dt * cam[2]]

    # --- MVS residual (pose row 3 residual is exactly zero; /4 in wrapper) ---
    acc = jnp.zeros_like(ds)
    for i in range(3):
        proj = (pose_ref[b, 4 * i + 0] * cs[0]
                + pose_ref[b, 4 * i + 1] * cs[1]
                + pose_ref[b, 4 * i + 2] * cs[2]
                + pose_ref[b, 4 * i + 3])
        acc = acc + jnp.abs(ct[i] - proj)
    mvs_ref[...] = jnp.full(mvs_ref.shape, jnp.sum(acc), jnp.float32)

    # --- projection to RAW pixel sampling coordinates (no [-1,1] round trip) --
    cp = [P_ref[b, 4 * i + 0] * cs[0]
          + P_ref[b, 4 * i + 1] * cs[1]
          + P_ref[b, 4 * i + 2] * cs[2]
          + P_ref[b, 4 * i + 3] for i in range(3)]
    inv_z = 1.0 / (cp[2] + 1e-6)           # exact divide: sampling coordinates
    grid_ref[0, 0] = cp[0] * inv_z
    grid_ref[0, 1] = cp[1] * inv_z


def mvs_and_project(depth_src, depth_tgt, pose, K, inv_K, pix_img):
    """Returns (mvs_loss_scalar, raw-pixel sampling grid (B,2,H,W))."""
    B = depth_src.shape[0]
    _, H, W = pix_img.shape
    P = (K @ pose)[:, :3, :]                                      # (B,3,4)
    band = _pick_band(H, bytes_per_row=(3 + 1 + 1 + 2) * W * 4)
    n_bands = H // band
    invk9 = inv_K[:, :3, :3].reshape(B, 9)
    pose16 = pose.reshape(B, 16)
    P12 = P.reshape(B, 12)
    blk_bytes = (3 + 1 + 1 + 2) * band * W * 4 + 8 * 128 * 4

    mvs_part, grid_raw = pl.pallas_call(
        _geom_kernel,
        out_shape=(jax.ShapeDtypeStruct((B, n_bands, 8, 128), jnp.float32),
                   jax.ShapeDtypeStruct((B, 2, H, W), jnp.float32)),
        grid=(B, n_bands),
        in_specs=[
            pl.BlockSpec((3, band, W), lambda b, r: (0, r, 0)),
            pl.BlockSpec((1, band, W), lambda b, r: (b, r, 0)),
            pl.BlockSpec((1, band, W), lambda b, r: (b, r, 0)),
            pl.BlockSpec(memory_space=SMEM),
            pl.BlockSpec(memory_space=SMEM),
            pl.BlockSpec(memory_space=SMEM),
        ],
        out_specs=(
            pl.BlockSpec((1, 1, 8, 128), lambda b, r: (b, r, 0, 0)),
            pl.BlockSpec((1, 2, band, W), lambda b, r: (b, 0, r, 0)),
        ),
        compiler_params=_mosaic_params(("parallel", "parallel"), blk_bytes),
    )(pix_img, depth_src.reshape(B, H, W), depth_tgt.reshape(B, H, W),
      invk9, pose16, P12)
    mvs = jnp.sum(mvs_part[:, :, 0, 0]) / (B * 4 * H * W)   # reduction == 'mean'
    return mvs, grid_raw


# ----------------------------------------------------------------------------
# Pallas kernel 2: epipolar loss (chunked pix^T K^-T R [t]x K^-1 pix_flow)
#   grid = (B, n_outer) ("parallel", "arbitrary")
#   K pixel chunks per grid step (amortizes per-step overhead); RHS of the
#   MXU product built once per step; (8,128) accumulator in the output.
# ----------------------------------------------------------------------------
def _epi_kernel(pix_ref, pixT_ref, flow_ref, w_ref, out_ref, *, K, g):
    b = pl.program_id(0)
    s = pl.program_id(1)

    @pl.when(s == 0)
    def _():
        out_ref[...] = jnp.zeros_like(out_ref)

    p0 = pix_ref[0:1, :]                                   # (1, K*g)
    p1 = pix_ref[1:2, :]
    pf0 = p0 + flow_ref[0, 0:1, :]
    pf1 = p1 + flow_ref[0, 1:2, :]
    # pix_flow row 2 is all ones -> fold W[:,2] in as a scalar add.
    # Built ONCE for all K chunks of this step (amortized wrt old per-chunk).
    wf = jnp.concatenate([
        w_ref[b, 0] * pf0 + w_ref[b, 1] * pf1 + w_ref[b, 2],
        w_ref[b, 3] * pf0 + w_ref[b, 4] * pf1 + w_ref[b, 5],
        w_ref[b, 6] * pf0 + w_ref[b, 7] * pf1 + w_ref[b, 8]], axis=0)  # (3,K*g)

    acc = jnp.zeros((8, 128), jnp.float32)
    for c in range(K):                                     # static unroll, K<=8
        # pixT (pixels-in-sublanes) is precomputed on host to avoid an
        # in-kernel transpose / transposed-LHS matmul; its DMA is tiny.
        pc = pixT_ref[c * g:(c + 1) * g, :]                # (g, 3)
        wc = wf[:, c * g:(c + 1) * g]                      # (3, g)
        sc = jnp.dot(pc, wc, preferred_element_type=jnp.float32)   # MXU (g,g)
        acc = acc + jnp.abs(sc).reshape(-1, 8, 128).sum(axis=0)
    out_ref[...] += acc[None]


def epipolar_loss(flow, pose, inv_K, pix, pixT, group_size=128,
                  max_chunks_per_step=8):
    B = flow.shape[0]
    HW = pix.shape[1]
    g = group_size if HW >= group_size else HW
    if HW % g != 0:
        # TODO(synk): ragged final pixel chunk (HW not a multiple of the group
        # size) is not implemented in the Pallas kernel.
        raise NotImplementedError("HW must be a multiple of the group size")
    if (g * g) % 1024 != 0:
        # the (8,128) fold needs g*g to be a multiple of 1024
        raise NotImplementedError("pixel group size must be a multiple of 32")

    invk3 = inv_K[:, :3, :3]
    rotation = pose[:, :3, :3]
    t = pose[:, :3, 3]
    tx, ty, tz = t[:, 0], t[:, 1], t[:, 2]
    zeros = jnp.zeros_like(tx)
    t_skew = jnp.stack([
        jnp.stack([zeros, -tz, ty], axis=-1),
        jnp.stack([tz, zeros, -tx], axis=-1),
        jnp.stack([-ty, tx, zeros], axis=-1)], axis=1)            # (B,3,3)
    Wm = jnp.swapaxes(invk3, 1, 2) @ (rotation @ t_skew @ invk3)  # (B,3,3)
    flow_flat = flow.reshape(B, 2, HW)

    nchunks = HW // g
    K = 1
    for k in range(1, max_chunks_per_step + 1):
        if nchunks % k == 0:
            K = k
    n_outer = nchunks // K
    blk_bytes = (3 + 3 + 2) * K * g * 4 + 8 * 128 * 4

    out = pl.pallas_call(
        functools.partial(_epi_kernel, K=K, g=g),
        out_shape=jax.ShapeDtypeStruct((B, 8, 128), jnp.float32),
        grid=(B, n_outer),
        in_specs=[
            pl.BlockSpec((3, K * g), lambda b, s: (0, s)),
            pl.BlockSpec((K * g, 3), lambda b, s: (s, 0)),
            pl.BlockSpec((1, 2, K * g), lambda b, s: (b, 0, s)),
            pl.BlockSpec(memory_space=SMEM),
        ],
        out_specs=pl.BlockSpec((1, 8, 128), lambda b, s: (b, 0, 0)),
        compiler_params=_mosaic_params(("parallel", "arbitrary"), blk_bytes),
    )(pix, pixT, flow_flat, Wm.reshape(B, 9))
    return jnp.sum(out) / HW              # reduction == 'mean', group_size > 1


# ----------------------------------------------------------------------------
# grid_sample (bilinear, padding_mode='border', align_corners=True),
# operating on RAW pixel coordinates.
# TODO(synk): data-dependent bilinear gather stays in XLA; a fused Pallas
#             version needs per-row DMA gather (scalar-prefetched y indices).
# ----------------------------------------------------------------------------
@jax.jit
def grid_sample_pixel(img, px, py):
    B, C, H, W = img.shape
    px = jnp.clip(px, 0.0, float(W - 1))
    py = jnp.clip(py, 0.0, float(H - 1))
    x0 = jnp.floor(px)
    y0 = jnp.floor(py)
    wx1 = px - x0
    wy1 = py - y0
    wx0 = 1.0 - wx1
    wy0 = 1.0 - wy1
    x0i = x0.astype(jnp.int32)
    y0i = y0.astype(jnp.int32)
    x1i = jnp.minimum(x0i + 1, W - 1)
    y1i = jnp.minimum(y0i + 1, H - 1)
    flat = img.reshape(B, C, H * W)

    def gather(yi, xi):
        idx = (yi * W + xi).reshape(B, 1, H * W)
        idx = jnp.broadcast_to(idx, (B, C, H * W))
        return jnp.take_along_axis(flat, idx, axis=2).reshape(B, C, H, W)

    v00 = gather(y0i, x0i)
    v01 = gather(y0i, x1i)
    v10 = gather(y1i, x0i)
    v11 = gather(y1i, x1i)
    return (v00 * (wy0 * wx0)[:, None] + v01 * (wy0 * wx1)[:, None]
            + v10 * (wy1 * wx0)[:, None] + v11 * (wy1 * wx1)[:, None])


# ----------------------------------------------------------------------------
# Pallas kernel 3: SSIM + L1 photometric combine + min + reduce
#   grid = (B, C) ("parallel", "arbitrary"); channel axis is a reduction with
#   VMEM scratch accumulators; mu_x / sigma_x shared between the two branches;
#   separable 3x3 reflect pooling on native (H, W).
# ----------------------------------------------------------------------------
def _apc_kernel(tgt_ref, w3_ref, wf_ref, out_ref, acc3_ref, accf_ref, *, r, C):
    c = pl.program_id(1)
    _, _, H, W = tgt_ref.shape
    C1 = 0.01 ** 2
    C2 = 0.03 ** 2

    def pool3(a):
        # separable 3x3 mean, 1-px reflect border, no (H+2, W+2) allocation.
        # TODO(synk): use pltpu.roll + border masks when W is lane-aligned.
        up = jnp.concatenate([a[1:2, :], a[:H - 1, :]], axis=0)
        dn = jnp.concatenate([a[1:, :], a[H - 2:H - 1, :]], axis=0)
        col = up + a + dn
        lf = jnp.concatenate([col[:, 1:2], col[:, :W - 1]], axis=1)
        rt = jnp.concatenate([col[:, 1:], col[:, W - 2:W - 1]], axis=1)
        return (lf + col + rt) * (1.0 / 9.0)

    @pl.when(c == 0)
    def _():
        acc3_ref[...] = jnp.zeros_like(acc3_ref)
        accf_ref[...] = jnp.zeros_like(accf_ref)
        out_ref[...] = jnp.zeros_like(out_ref)

    x = tgt_ref[0, 0]
    mu_x = pool3(x)                          # shared by both warp branches
    sig_x = pool3(x * x) - mu_x * mu_x

    def per_pixel_loss(y):
        mu_y = pool3(y)
        sig_y = pool3(y * y) - mu_y * mu_y
        sig_xy = pool3(x * y) - mu_x * mu_y
        n = (2.0 * mu_x * mu_y + C1) * (2.0 * sig_xy + C2)
        den = (mu_x * mu_x + mu_y * mu_y + C1) * (sig_x + sig_y + C2)
        # SSIM() returns the SSIM map; the module's r*(1-ssim)/2 + (1-r)*l1 is
        # therefore the standard DSSIM combine, applied exactly once here.
        dssim = (1.0 - n * pl.reciprocal(den, approx=True)) * 0.5
        return r * dssim + (1.0 - r) * jnp.abs(x - y)

    acc3_ref[...] += per_pixel_loss(w3_ref[0, 0])
    accf_ref[...] += per_pixel_loss(wf_ref[0, 0])

    @pl.when(c == C - 1)
    def _():
        per_pix = jnp.minimum(acc3_ref[...], accf_ref[...]) * (1.0 / C)
        out_ref[...] = jnp.full(out_ref.shape, jnp.sum(per_pix), jnp.float32)


def adaptive_photometric_loss(img_src, img_tgt, grid_raw, flow, pix_img, ssim_r):
    B, C, H, W = img_src.shape
    # 3D branch: grid_raw already holds raw pixel coordinates.
    warped_3d = grid_sample_pixel(img_src, grid_raw[:, 0], grid_raw[:, 1])
    # Flow branch: the reference feeds RAW (pix + flow) coords to grid_sample,
    # which interprets them as normalized [-1,1] coords (align_corners=True).
    fx = (pix_img[0][None] + flow[:, 0] + 1.0) * 0.5 * (W - 1)
    fy = (pix_img[1][None] + flow[:, 1] + 1.0) * 0.5 * (H - 1)
    warped_fl = grid_sample_pixel(img_src, fx, fy)

    # TODO(synk): at production resolutions add a row-band grid axis with a
    # 1-row pooling halo; per-channel (1,1,H,W) blocks already bound VMEM here.
    blk_bytes = 3 * H * W * 4 + 2 * H * W * 4 + 8 * 128 * 4
    out = pl.pallas_call(
        functools.partial(_apc_kernel, r=ssim_r, C=C),
        out_shape=jax.ShapeDtypeStruct((B, 8, 128), jnp.float32),
        grid=(B, C),
        in_specs=[pl.BlockSpec((1, 1, H, W), lambda b, c: (b, c, 0, 0))] * 3,
        out_specs=pl.BlockSpec((1, 8, 128), lambda b, c: (b, 0, 0)),
        scratch_shapes=[pltpu.VMEM((H, W), jnp.float32),
                        pltpu.VMEM((H, W), jnp.float32)],
        compiler_params=_mosaic_params(("parallel", "arbitrary"), blk_bytes),
    )(img_tgt, warped_3d, warped_fl)
    return jnp.sum(out[:, 0, 0]) / (B * H * W)    # mean over (B,1,H,W)


# ----------------------------------------------------------------------------
# Pallas kernel 4: edge-aware smoothness, batched over the D "disp/flow"
# channels (image-gradient weights computed once).  grid = (B,) parallel.
# ----------------------------------------------------------------------------
def _smooth_kernel(d_ref, img_ref, out_ref, *, normalize, batch):
    _, D, H, W = d_ref.shape
    C = img_ref.shape[1]
    gix = jnp.zeros((H, W - 1), jnp.float32)
    giy = jnp.zeros((H - 1, W), jnp.float32)
    for c in range(C):
        im = img_ref[0, c]
        gix = gix + jnp.abs(im[:, :W - 1] - im[:, 1:])
        giy = giy + jnp.abs(im[:H - 1, :] - im[1:, :])
    wx = jnp.exp(-gix * (1.0 / C))
    wy = jnp.exp(-giy * (1.0 / C))

    total = jnp.zeros((), jnp.float32)
    for ch in range(D):
        d = d_ref[0, ch]
        if normalize:
            d = d / (jnp.mean(d) + 1e-7)
        gdx = jnp.abs(d[:, :W - 1] - d[:, 1:]) * wx
        gdy = jnp.abs(d[:H - 1, :] - d[1:, :]) * wy
        total = total + (jnp.sum(gdx) / float(batch * H * (W - 1))
                         + jnp.sum(gdy) / float(batch * (H - 1) * W))
    out_ref[...] = jnp.full(out_ref.shape, total, jnp.float32)


def smooth_loss(d, img, normalize):
    # d: (B, D, H, W) (D=1 for disp, D=2 for flow), img: (B, C, H, W)
    B, D, H, W = d.shape
    C = img.shape[1]
    blk_bytes = (D + C) * H * W * 4 + 8 * 128 * 4
    out = pl.pallas_call(
        functools.partial(_smooth_kernel, normalize=normalize, batch=B),
        out_shape=jax.ShapeDtypeStruct((B, 8, 128), jnp.float32),
        grid=(B,),
        in_specs=[
            pl.BlockSpec((1, D, H, W), lambda b: (b, 0, 0, 0)),
            pl.BlockSpec((1, C, H, W), lambda b: (b, 0, 0, 0)),
        ],
        out_specs=pl.BlockSpec((1, 8, 128), lambda b: (b, 0, 0)),
        compiler_params=_mosaic_params(("parallel",), blk_bytes),
    )(d, img)
    return jnp.sum(out[:, 0, 0])


# ----------------------------------------------------------------------------
# GLNetLoss (JAX/Pallas)
# ----------------------------------------------------------------------------
class GLNetLoss:
    def __init__(self, img_size, scales, mvs_weight, epi_weight, apc_weight,
                 disp_smooth, flow_smooth, flow_cons_params=None,
                 flow_cons_weight=0.0, ssim_r=0.85, reduction='mean'):
        assert reduction == 'mean'
        self.height, self.width = img_size
        self.scales = scales
        self.mvs_weight = mvs_weight
        self.epi_weight = epi_weight
        self.apc_weight = apc_weight
        self.disp_smooth = disp_smooth
        self.flow_smooth = flow_smooth
        self.flow_cons_params = flow_cons_params
        self.flow_cons_weight = flow_cons_weight
        self.ssim_r = ssim_r
        self.pix_flat = {}
        self.pix_img = {}
        self.pixT = {}
        for s in range(scales):
            Hs, Ws = self.height // 2 ** s, self.width // 2 ** s
            p = generate_pix_coords(Hs, Ws)                    # (3, HW)
            self.pix_flat[s] = jnp.asarray(p)
            self.pix_img[s] = jnp.asarray(p.reshape(3, Hs, Ws))
            self.pixT[s] = jnp.asarray(np.ascontiguousarray(p.T))

    def forward(self, inputs, depths, poses, flows_fwd, scales,
                disps=None, flows_bwd=None):
        pose_frames = list(poses.keys())
        flow_frames = list(flows_fwd.keys())
        calc_disp_smooth = disps is not None and self.disp_smooth != 0.0
        calc_flow_smooth = self.flow_smooth != 0.0
        calc_flow_consistency = flows_bwd is not None and self.flow_cons_weight != 0.0

        mvs_loss = 0.0
        epi_loss = 0.0
        apc_loss = 0.0
        ds_loss = 0.0
        fs_loss = 0.0
        fc_loss = 0.0

        for scale in range(scales):
            for frame_group in list(set(pose_frames) & set(flow_frames)):
                pose_params = poses[frame_group]
                flow_fwd = flows_fwd[frame_group]['flow', scale]
                depth_src = depths[frame_group[0]]['depth', scale]
                depth_tgt = depths[frame_group[-1]]['depth', scale]
                inv_intr = inputs['inv_K', scale]
                intr = inputs['K', scale]
                image_src = inputs['color', frame_group[0], scale]
                image_tgt = inputs['color', frame_group[-1], scale]
                pose = transformation_from_parameters(
                    pose_params['axisangle'], pose_params['translation'])

                # fused MVS + back-project/project_3d (one HBM pass, one launch)
                mvs_i, grid_raw = mvs_and_project(depth_src, depth_tgt, pose,
                                                  intr, inv_intr,
                                                  self.pix_img[scale])
                mvs_loss += mvs_i
                epi_loss += epipolar_loss(flow_fwd, pose, inv_intr,
                                          self.pix_flat[scale], self.pixT[scale],
                                          group_size=128)
                apc_loss += adaptive_photometric_loss(
                    image_src, image_tgt, grid_raw, flow_fwd,
                    self.pix_img[scale], self.ssim_r)

            if calc_disp_smooth:
                for frame_id, disp_i in disps.items():
                    disp_e = disp_i['disp', scale]
                    ds_loss += (self.disp_smooth / 2 ** scale
                                * smooth_loss(disp_e,
                                              inputs['color', frame_id, scale],
                                              normalize=True))
            if calc_flow_smooth:
                div = 2 ** (scale + 1) if flows_bwd is not None else 2 ** scale
                for fg, flow_fwd_i in flows_fwd.items():
                    # both flow channels in ONE kernel call (weights shared)
                    fs_loss += (self.flow_smooth / div
                                * smooth_loss(flow_fwd_i['flow', scale],
                                              inputs['color', fg[-1], scale],
                                              normalize=False))
                    if flows_bwd is not None:
                        fs_loss += (self.flow_smooth / div
                                    * smooth_loss(flows_bwd[fg]['flow', scale],
                                                  inputs['color', fg[0], scale],
                                                  normalize=False))
            if calc_flow_consistency:
                # TODO(synk): fwd/bwd flow consistency not exercised here
                # (flows_bwd=None in this synthetic run); it would follow the
                # same JAX-gather + Pallas-reduce split as the photometric path.
                pass

        total = (self.mvs_weight * mvs_loss
                 + self.epi_weight * epi_loss
                 + self.apc_weight * apc_loss)
        if calc_disp_smooth:
            total += ds_loss
        if calc_flow_smooth:
            total += fs_loss
        if calc_flow_consistency:
            total += self.flow_cons_weight * fc_loss
        total /= self.scales
        parts = {'mvs': mvs_loss / self.scales, 'epi': epi_loss / self.scales,
                 'apc': apc_loss / self.scales, 'ds': ds_loss / self.scales,
                 'fs': fs_loss / self.scales, 'fc': fc_loss / self.scales}
        return total, parts


# ----------------------------------------------------------------------------
# main
# ----------------------------------------------------------------------------
if __name__ == "__main__":
    B, H, W = 2, 16, 16
    num_scales = 2
    frame_group = (-1, 0)

    key = jax.random.PRNGKey(0)
    keys = jax.random.split(key, 20)
    kidx = 0

    loss_mod = GLNetLoss((H, W), num_scales,
                         mvs_weight=1.0, epi_weight=0.01, apc_weight=1.0,
                         disp_smooth=0.1, flow_smooth=0.1,
                         flow_cons_params=(1.0, 0.05), flow_cons_weight=0.0,
                         ssim_r=0.85, reduction='mean')

    inputs = {}
    depths = {-1: {}, 0: {}}
    disps = {-1: {}, 0: {}}
    flows_fwd = {frame_group: {}}
    for s in range(num_scales):
        Hs, Ws = H // 2 ** s, W // 2 ** s
        K = np.eye(4, dtype=np.float32)
        K[0, 0] = 0.58 * Ws
        K[1, 1] = 1.92 * Hs
        K[0, 2] = 0.5 * Ws
        K[1, 2] = 0.5 * Hs
        inv_K = np.linalg.inv(K).astype(np.float32)
        inputs['K', s] = jnp.broadcast_to(jnp.asarray(K), (B, 4, 4)).astype(jnp.float32)
        inputs['inv_K', s] = jnp.broadcast_to(jnp.asarray(inv_K), (B, 4, 4)).astype(jnp.float32)
        for fid in (-1, 0):
            inputs['color', fid, s] = jax.random.uniform(keys[kidx], (B, 3, Hs, Ws), jnp.float32)
            kidx += 1
            depths[fid]['depth', s] = jax.random.uniform(keys[kidx], (B, 1, Hs, Ws), jnp.float32,
                                                         minval=1.0, maxval=10.0)
            kidx += 1
            disps[fid]['disp', s] = jax.random.uniform(keys[kidx], (B, 1, Hs, Ws), jnp.float32,
                                                       minval=0.01, maxval=1.0)
            kidx += 1
        flows_fwd[frame_group]['flow', s] = 0.5 * jax.random.normal(keys[kidx], (B, 2, Hs, Ws), jnp.float32)
        kidx += 1

    poses = {frame_group: {
        'axisangle': 0.01 * jax.random.normal(keys[kidx], (B, 1, 3), jnp.float32),
        'translation': 0.01 * jax.random.normal(keys[kidx + 1], (B, 1, 3), jnp.float32),
    }}

    total_loss, loss_parts = loss_mod.forward(inputs, depths, poses, flows_fwd,
                                              num_scales, disps=disps, flows_bwd=None)
    total_loss = jax.block_until_ready(total_loss)
    assert np.isfinite(float(total_loss))
    print("KERNEL_OK")
</pallas_src>

<mosaic_0001>
module attributes {stable_mosaic.version = 11 : i64} {
  func.func @_geom_kernel(%arg0: i32, %arg1: i32, %arg2: memref<3x16x16xf32, #tpu.memory_space<vmem>>, %arg3: memref<1x16x16xf32, #tpu.memory_space<vmem>>, %arg4: memref<1x16x16xf32, #tpu.memory_space<vmem>>, %arg5: memref<2x9xf32, #tpu.memory_space<smem>>, %arg6: memref<2x16xf32, #tpu.memory_space<smem>>, %arg7: memref<2x12xf32, #tpu.memory_space<smem>>, %arg8: memref<1x1x8x128xf32, #tpu.memory_space<vmem>>, %arg9: memref<1x2x16x16xf32, #tpu.memory_space<vmem>>) attributes {dimension_semantics = [#tpu.dimension_semantics<parallel>, #tpu.dimension_semantics<parallel>], iteration_bounds = array<i64: 2, 1>, scalar_prefetch = 0 : i64, scratch_operands = 0 : i64, tpu.core_type = #tpu.core_type<tc>, window_params = [{transform_indices = @transform_0, window_bounds = array<i64: 3, 16, 16>}, {transform_indices = @transform_1, window_bounds = array<i64: 1, 16, 16>}, {transform_indices = @transform_2, window_bounds = array<i64: 1, 16, 16>}, {transform_indices = @transform_3, window_bounds = array<i64: 2, 9>}, {transform_indices = @transform_4, window_bounds = array<i64: 2, 16>}, {transform_indices = @transform_5, window_bounds = array<i64: 2, 12>}, {transform_indices = @transform_6, window_bounds = array<i64: 1, 1, 8, 128>}, {transform_indices = @transform_7, window_bounds = array<i64: 1, 2, 16, 16>}]} {
    %c0 = arith.constant 0 : index
    %c0_0 = arith.constant 0 : index
    %c0_1 = arith.constant 0 : index
    %0 = vector.load %arg2[%c0, %c0_0, %c0_1] : memref<3x16x16xf32, #tpu.memory_space<vmem>>, vector<1x16x16xf32>
    %1 = vector.shape_cast %0 : vector<1x16x16xf32> to vector<16x16xf32>
    %c1 = arith.constant 1 : index
    %c0_2 = arith.constant 0 : index
    %c0_3 = arith.constant 0 : index
    %2 = vector.load %arg2[%c1, %c0_2, %c0_3] : memref<3x16x16xf32, #tpu.memory_space<vmem>>, vector<1x16x16xf32>
    %3 = vector.shape_cast %2 : vector<1x16x16xf32> to vector<16x16xf32>
    %c2 = arith.constant 2 : index
    %c0_4 = arith.constant 0 : index
    %c0_5 = arith.constant 0 : index
    %4 = vector.load %arg2[%c2, %c0_4, %c0_5] : memref<3x16x16xf32, #tpu.memory_space<vmem>>, vector<1x16x16xf32>
    %5 = vector.shape_cast %4 : vector<1x16x16xf32> to vector<16x16xf32>
    %6 = arith.index_cast %arg0 : i32 to index
    %c0_6 = arith.constant 0 : index
    %7 = memref.load %arg5[%6, %c0_6] : memref<2x9xf32, #tpu.memory_space<smem>>
    %8 = vector.broadcast %7 : f32 to vector<16x16xf32>
    %9 = arith.mulf %8, %1 : vector<16x16xf32>
    %10 = arith.index_cast %arg0 : i32 to index
    %c1_7 = arith.constant 1 : index
    %11 = memref.load %arg5[%10, %c1_7] : memref<2x9xf32, #tpu.memory_space<smem>>
    %12 = vector.broadcast %11 : f32 to vector<16x16xf32>
    %13 = arith.mulf %12, %3 : vector<16x16xf32>
    %14 = arith.addf %9, %13 : vector<16x16xf32>
    %15 = arith.index_cast %arg0 : i32 to index
    %c2_8 = arith.constant 2 : index
    %16 = memref.load %arg5[%15, %c2_8] : memref<2x9xf32, #tpu.memory_space<smem>>
    %17 = vector.broadcast %16 : f32 to vector<16x16xf32>
    %18 = arith.mulf %17, %5 : vector<16x16xf32>
    %19 = arith.addf %14, %18 : vector<16x16xf32>
    %20 = arith.index_cast %arg0 : i32 to index
    %c3 = arith.constant 3 : index
    %21 = memref.load %arg5[%20, %c3] : memref<2x9xf32, #tpu.memory_space<smem>>
    %22 = vector.broadcast %21 : f32 to vector<16x16xf32>
    %23 = arith.mulf %22, %1 : vector<16x16xf32>
    %24 = arith.index_cast %arg0 : i32 to index
    %c4 = arith.constant 4 : index
    %25 = memref.load %arg5[%24, %c4] : memref<2x9xf32, #tpu.memory_space<smem>>
    %26 = vector.broadcast %25 : f32 to vector<16x16xf32>
    %27 = arith.mulf %26, %3 : vector<16x16xf32>
    %28 = arith.addf %23, %27 : vector<16x16xf32>
    %29 = arith.index_cast %arg0 : i32 to index
    %c5 = arith.constant 5 : index
    %30 = memref.load %arg5[%29, %c5] : memref<2x9xf32, #tpu.memory_space<smem>>
    %31 = vector.broadcast %30 : f32 to vector<16x16xf32>
    %32 = arith.mulf %31, %5 : vector<16x16xf32>
    %33 = arith.addf %28, %32 : vector<16x16xf32>
    %34 = arith.index_cast %arg0 : i32 to index
    %c6 = arith.constant 6 : index
    %35 = memref.load %arg5[%34, %c6] : memref<2x9xf32, #tpu.memory_space<smem>>
    %36 = vector.broadcast %35 : f32 to vector<16x16xf32>
    %37 = arith.mulf %36, %1 : vector<16x16xf32>
    %38 = arith.index_cast %arg0 : i32 to index
    %c7 = arith.constant 7 : index
    %39 = memref.load %arg5[%38, %c7] : memref<2x9xf32, #tpu.memory_space<smem>>
    %40 = vector.broadcast %39 : f32 to vector<16x16xf32>
    %41 = arith.mulf %40, %3 : vector<16x16xf32>
    %42 = arith.addf %37, %41 : vector<16x16xf32>
    %43 = arith.index_cast %arg0 : i32 to index
    %c8 = arith.constant 8 : index
    %44 = memref.load %arg5[%43, %c8] : memref<2x9xf32, #tpu.memory_space<smem>>
    %45 = vector.broadcast %44 : f32 to vector<16x16xf32>
    %46 = arith.mulf %45, %5 : vector<16x16xf32>
    %47 = arith.addf %42, %46 : vector<16x16xf32>
    %c0_9 = arith.constant 0 : index
    %c0_10 = arith.constant 0 : index
    %c0_11 = arith.constant 0 : index
    %48 = vector.load %arg3[%c0_9, %c0_10, %c0_11] : memref<1x16x16xf32, #tpu.memory_space<vmem>>, vector<1x16x16xf32>
    %49 = vector.shape_cast %48 : vector<1x16x16xf32> to vector<16x16xf32>
    %c0_12 = arith.constant 0 : index
    %c0_13 = arith.constant 0 : index
    %c0_14 = arith.constant 0 : index
    %50 = vector.load %arg4[%c0_12, %c0_13, %c0_14] : memref<1x16x16xf32, #tpu.memory_space<vmem>>, vector<1x16x16xf32>
    %51 = vector.shape_cast %50 : vector<1x16x16xf32> to vector<16x16xf32>
    %52 = arith.mulf %49, %19 : vector<16x16xf32>
    %53 = arith.mulf %49, %33 : vector<16x16xf32>
    %54 = arith.mulf %49, %47 : vector<16x16xf32>
    %55 = arith.mulf %51, %19 : vector<16x16xf32>
    %56 = arith.mulf %51, %33 : vector<16x16xf32>
    %57 = arith.mulf %51, %47 : vector<16x16xf32>
    %cst = arith.constant 0.000000e+00 : f32
    %58 = vector.broadcast %cst : f32 to vector<16x16xf32>
    %59 = arith.index_cast %arg0 : i32 to index
    %c0_15 = arith.constant 0 : index
    %60 = memref.load %arg6[%59, %c0_15] : memref<2x16xf32, #tpu.memory_space<smem>>
    %61 = vector.broadcast %60 : f32 to vector<16x16xf32>
    %62 = arith.mulf %61, %52 : vector<16x16xf32>
    %63 = arith.index_cast %arg0 : i32 to index
    %c1_16 = arith.constant 1 : index
    %64 = memref.load %arg6[%63, %c1_16] : memref<2x16xf32, #tpu.memory_space<smem>>
    %65 = vector.broadcast %64 : f32 to vector<16x16xf32>
    %66 = arith.mulf %65, %53 : vector<16x16xf32>
    %67 = arith.addf %62, %66 : vector<16x16xf32>
    %68 = arith.index_cast %arg0 : i32 to index
    %c2_17 = arith.constant 2 : index
    %69 = memref.load %arg6[%68, %c2_17] : memref<2x16xf32, #tpu.memory_space<smem>>
    %70 = vector.broadcast %69 : f32 to vector<16x16xf32>
    %71 = arith.mulf %70, %54 : vector<16x16xf32>
    %72 = arith.addf %67, %71 : vector<16x16xf32>
    %73 = arith.index_cast %arg0 : i32 to index
    %c3_18 = arith.constant 3 : index
    %74 = memref.load %arg6[%73, %c3_18] : memref<2x16xf32, #tpu.memory_space<smem>>
    %75 = vector.broadcast %74 : f32 to vector<16x16xf32>
    %76 = arith.addf %72, %75 : vector<16x16xf32>
    %77 = arith.subf %55, %76 : vector<16x16xf32>
    %78 = math.absf %77 : vector<16x16xf32>
    %79 = arith.addf %58, %78 : vector<16x16xf32>
    %80 = arith.index_cast %arg0 : i32 to index
    %c4_19 = arith.constant 4 : index
    %81 = memref.load %arg6[%80, %c4_19] : memref<2x16xf32, #tpu.memory_space<smem>>
    %82 = vector.broadcast %81 : f32 to vector<16x16xf32>
    %83 = arith.mulf %82, %52 : vector<16x16xf32>
    %84 = arith.index_cast %arg0 : i32 to index
    %c5_20 = arith.constant 5 : index
    %85 = memref.load %arg6[%84, %c5_20] : memref<2x16xf32, #tpu.memory_space<smem>>
    %86 = vector.broadcast %85 : f32 to vector<16x16xf32>
    %87 = arith.mulf %86, %53 : vector<16x16xf32>
    %88 = arith.addf %83, %87 : vector<16x16xf32>
    %89 = arith.index_cast %arg0 : i32 to index
    %c6_21 = arith.constant 6 : index
    %90 = memref.load %arg6[%89, %c6_21] : memref<2x16xf32, #tpu.memory_space<smem>>
    %91 = vector.broadcast %90 : f32 to vector<16x16xf32>
    %92 = arith.mulf %91, %54 : vector<16x16xf32>
    %93 = arith.addf %88, %92 : vector<16x16xf32>
    %94 = arith.index_cast %arg0 : i32 to index
    %c7_22 = arith.constant 7 : index
    %95 = memref.load %arg6[%94, %c7_22] : memref<2x16xf32, #tpu.memory_space<smem>>
    %96 = vector.broadcast %95 : f32 to vector<16x16xf32>
    %97 = arith.addf %93, %96 : vector<16x16xf32>
    %98 = arith.subf %56, %97 : vector<16x16xf32>
    %99 = math.absf %98 : vector<16x16xf32>
    %100 = arith.addf %79, %99 : vector<16x16xf32>
    %101 = arith.index_cast %arg0 : i32 to index
    %c8_23 = arith.constant 8 : index
    %102 = memref.load %arg6[%101, %c8_23] : memref<2x16xf32, #tpu.memory_space<smem>>
    %103 = vector.broadcast %102 : f32 to vector<16x16xf32>
    %104 = arith.mulf %103, %52 : vector<16x16xf32>
    %105 = arith.index_cast %arg0 : i32 to index
    %c9 = arith.constant 9 : index
    %106 = memref.load %arg6[%105, %c9] : memref<2x16xf32, #tpu.memory_space<smem>>
    %107 = vector.broadcast %106 : f32 to vector<16x16xf32>
    %108 = arith.mulf %107, %53 : vector<16x16xf32>
    %109 = arith.addf %104, %108 : vector<16x16xf32>
    %110 = arith.index_cast %arg0 : i32 to index
    %c10 = arith.constant 10 : index
    %111 = memref.load %arg6[%110, %c10] : memref<2x16xf32, #tpu.memory_space<smem>>
    %112 = vector.broadcast %111 : f32 to vector<16x16xf32>
    %113 = arith.mulf %112, %54 : vector<16x16xf32>
    %114 = arith.addf %109, %113 : vector<16x16xf32>
    %115 = arith.index_cast %arg0 : i32 to index
    %c11 = arith.constant 11 : index
    %116 = memref.load %arg6[%115, %c11] : memref<2x16xf32, #tpu.memory_space<smem>>
    %117 = vector.broadcast %116 : f32 to vector<16x16xf32>
    %118 = arith.addf %114, %117 : vector<16x16xf32>
    %119 = arith.subf %57, %118 : vector<16x16xf32>
    %120 = math.absf %119 : vector<16x16xf32>
    %121 = arith.addf %100, %120 : vector<16x16xf32>
    %122 = vector.shape_cast %121 : vector<16x16xf32> to vector<1x16x16xf32>
    %cst_24 = arith.constant dense<0.000000e+00> : vector<1xf32>
    %123 = vector.multi_reduction <add>, %122, %cst_24 [1, 2] : vector<1x16x16xf32> to vector<1xf32>
    %124 = vector.shape_cast %123 : vector<1xf32> to vector<1x1x1xf32>
    %125 = vector.extract %124[0, 0, 0] : f32 from vector<1x1x1xf32>
    %126 = vector.broadcast %125 : f32 to vector<1x1x8x128xf32>
    %c0_25 = arith.constant 0 : index
    %c0_26 = arith.constant 0 : index
    %c0_27 = arith.constant 0 : index
    %c0_28 = arith.constant 0 : index
    %127 = vector.load %arg8[%c0_25, %c0_26, %c0_27, %c0_28] : memref<1x1x8x128xf32, #tpu.memory_space<vmem>>, vector<1x1x8x128xf32>
    tpu.vector_store %arg8[%c0_25, %c0_26, %c0_27, %c0_28], %126 {strides = array<i32>} : memref<1x1x8x128xf32, #tpu.memory_space<vmem>>, vector<1x1x8x128xf32>,
    %128 = arith.index_cast %arg0 : i32 to index
    %c0_29 = arith.constant 0 : index
    %129 = memref.load %arg7[%128, %c0_29] : memref<2x12xf32, #tpu.memory_space<smem>>
    %130 = vector.broadcast %129 : f32 to vector<16x16xf32>
    %131 = arith.mulf %130, %52 : vector<16x16xf32>
    %132 = arith.index_cast %arg0 : i32 to index
    %c1_30 = arith.constant 1 : index
    %133 = memref.load %arg7[%132, %c1_30] : memref<2x12xf32, #tpu.memory_space<smem>>
    %134 = vector.broadcast %133 : f32 to vector<16x16xf32>
    %135 = arith.mulf %134, %53 : vector<16x16xf32>
    %136 = arith.addf %131, %135 : vector<16x16xf32>
    %137 = arith.index_cast %arg0 : i32 to index
    %c2_31 = arith.constant 2 : index
    %138 = memref.load %arg7[%137, %c2_31] : memref<2x12xf32, #tpu.memory_space<smem>>
    %139 = vector.broadcast %138 : f32 to vector<16x16xf32>
    %140 = arith.mulf %139, %54 : vector<16x16xf32>
    %141 = arith.addf %136, %140 : vector<16x16xf32>
    %142 = arith.index_cast %arg0 : i32 to index
    %c3_32 = arith.constant 3 : index
    %143 = memref.load %arg7[%142, %c3_32] : memref<2x12xf32, #tpu.memory_space<smem>>
    %144 = vector.broadcast %143 : f32 to vector<16x16xf32>
    %145 = arith.addf %141, %144 : vector<16x16xf32>
    %146 = arith.index_cast %arg0 : i32 to index
    %c4_33 = arith.constant 4 : index
    %147 = memref.load %arg7[%146, %c4_33] : memref<2x12xf32, #tpu.memory_space<smem>>
    %148 = vector.broadcast %147 : f32 to vector<16x16xf32>
    %149 = arith.mulf %148, %52 : vector<16x16xf32>
    %150 = arith.index_cast %arg0 : i32 to index
    %c5_34 = arith.constant 5 : index
    %151 = memref.load %arg7[%150, %c5_34] : memref<2x12xf32, #tpu.memory_space<smem>>
    %152 = vector.broadcast %151 : f32 to vector<16x16xf32>
    %153 = arith.mulf %152, %53 : vector<16x16xf32>
    %154 = arith.addf %149, %153 : vector<16x16xf32>
    %155 = arith.index_cast %arg0 : i32 to index
    %c6_35 = arith.constant 6 : index
    %156 = memref.load %arg7[%155, %c6_35] : memref<2x12xf32, #tpu.memory_space<smem>>
    %157 = vector.broadcast %156 : f32 to vector<16x16xf32>
    %158 = arith.mulf %157, %54 : vector<16x16xf32>
    %159 = arith.addf %154, %158 : vector<16x16xf32>
    %160 = arith.index_cast %arg0 : i32 to index
    %c7_36 = arith.constant 7 : index
    %161 = memref.load %arg7[%160, %c7_36] : memref<2x12xf32, #tpu.memory_space<smem>>
    %162 = vector.broadcast %161 : f32 to vector<16x16xf32>
    %163 = arith.addf %159, %162 : vector<16x16xf32>
    %164 = arith.index_cast %arg0 : i32 to index
    %c8_37 = arith.constant 8 : index
    %165 = memref.load %arg7[%164, %c8_37] : memref<2x12xf32, #tpu.memory_space<smem>>
    %166 = vector.broadcast %165 : f32 to vector<16x16xf32>
    %167 = arith.mulf %166, %52 : vector<16x16xf32>
    %168 = arith.index_cast %arg0 : i32 to index
    %c9_38 = arith.constant 9 : index
    %169 = memref.load %arg7[%168, %c9_38] : memref<2x12xf32, #tpu.memory_space<smem>>
    %170 = vector.broadcast %169 : f32 to vector<16x16xf32>
    %171 = arith.mulf %170, %53 : vector<16x16xf32>
    %172 = arith.addf %167, %171 : vector<16x16xf32>
    %173 = arith.index_cast %arg0 : i32 to index
    %c10_39 = arith.constant 10 : index
    %174 = memref.load %arg7[%173, %c10_39] : memref<2x12xf32, #tpu.memory_space<smem>>
    %175 = vector.broadcast %174 : f32 to vector<16x16xf32>
    %176 = arith.mulf %175, %54 : vector<16x16xf32>
    %177 = arith.addf %172, %176 : vector<16x16xf32>
    %178 = arith.index_cast %arg0 : i32 to index
    %c11_40 = arith.constant 11 : index
    %179 = memref.load %arg7[%178, %c11_40] : memref<2x12xf32, #tpu.memory_space<smem>>
    %180 = vector.broadcast %179 : f32 to vector<16x16xf32>
    %181 = arith.addf %177, %180 : vector<16x16xf32>
    %cst_41 = arith.constant 9.99999997E-7 : f32
    %182 = vector.broadcast %cst_41 : f32 to vector<16x16xf32>
    %183 = arith.addf %181, %182 : vector<16x16xf32>
    %cst_42 = arith.constant 1.000000e+00 : f32
    %184 = vector.broadcast %cst_42 : f32 to vector<16x16xf32>
    %185 = arith.divf %184, %183 : vector<16x16xf32>
    %186 = arith.mulf %145, %185 : vector<16x16xf32>
    %c0_43 = arith.constant 0 : index
    %c0_44 = arith.constant 0 : index
    %c0_45 = arith.constant 0 : index
    %c0_46 = arith.constant 0 : index
    %187 = vector.load %arg9[%c0_43, %c0_44, %c0_45, %c0_46] : memref<1x2x16x16xf32, #tpu.memory_space<vmem>>, vector<1x1x16x16xf32>
    %188 = vector.shape_cast %187 : vector<1x1x16x16xf32> to vector<16x16xf32>
    %189 = vector.shape_cast %186 : vector<16x16xf32> to vector<1x1x16x16xf32>
    tpu.vector_store %arg9[%c0_43, %c0_44, %c0_45, %c0_46], %189 {strides = array<i32>} : memref<1x2x16x16xf32, #tpu.memory_space<vmem>>, vector<1x1x16x16xf32>,
    %190 = arith.mulf %163, %185 : vector<16x16xf32>
    %c0_47 = arith.constant 0 : index
    %c1_48 = arith.constant 1 : index
    %c0_49 = arith.constant 0 : index
    %c0_50 = arith.constant 0 : index
    %191 = vector.load %arg9[%c0_47, %c1_48, %c0_49, %c0_50] : memref<1x2x16x16xf32, #tpu.memory_space<vmem>>, vector<1x1x16x16xf32>
    %192 = vector.shape_cast %191 : vector<1x1x16x16xf32> to vector<16x16xf32>
    %193 = vector.shape_cast %190 : vector<16x16xf32> to vector<1x1x16x16xf32>
    tpu.vector_store %arg9[%c0_47, %c1_48, %c0_49, %c0_50], %193 {strides = array<i32>} : memref<1x2x16x16xf32, #tpu.memory_space<vmem>>, vector<1x1x16x16xf32>,
    return
  }
  func.func @transform_0(%arg0: i32, %arg1: i32) -> (i32, i32, i32) {
    %c0_i32 = arith.constant 0 : i32
    %c0_i32_0 = arith.constant 0 : i32
    %c0_i32_1 = arith.constant 0 : i32
    return %c0_i32, %arg1, %c0_i32_0 : i32, i32, i32
  }
  func.func @transform_1(%arg0: i32, %arg1: i32) -> (i32, i32, i32) {
    %c0_i32 = arith.constant 0 : i32
    %c0_i32_0 = arith.constant 0 : i32
    return %arg0, %arg1, %c0_i32 : i32, i32, i32
  }
  func.func @transform_2(%arg0: i32, %arg1: i32) -> (i32, i32, i32) {
    %c0_i32 = arith.constant 0 : i32
    %c0_i32_0 = arith.constant 0 : i32
    return %arg0, %arg1, %c0_i32 : i32, i32, i32
  }
  func.func @transform_3(%arg0: i32, %arg1: i32) -> (i32, i32) {
    %c0_i32 = arith.constant 0 : i32
    %c0_i32_0 = arith.constant 0 : i32
    %c0_i32_1 = arith.constant 0 : i32
    return %c0_i32, %c0_i32_0 : i32, i32
  }
  func.func @transform_4(%arg0: i32, %arg1: i32) -> (i32, i32) {
    %c0_i32 = arith.constant 0 : i32
    %c0_i32_0 = arith.constant 0 : i32
    %c0_i32_1 = arith.constant 0 : i32
    return %c0_i32, %c0_i32_0 : i32, i32
  }
  func.func @transform_5(%arg0: i32, %arg1: i32) -> (i32, i32) {
    %c0_i32 = arith.constant 0 : i32
    %c0_i32_0 = arith.constant 0 : i32
    %c0_i32_1 = arith.constant 0 : i32
    return %c0_i32, %c0_i32_0 : i32, i32
  }
  func.func @transform_6(%arg0: i32, %arg1: i32) -> (i32, i32, i32, i32) {
    %c0_i32 = arith.constant 0 : i32
    %c0_i32_0 = arith.constant 0 : i32
    %c0_i32_1 = arith.constant 0 : i32
    return %arg0, %arg1, %c0_i32, %c0_i32_0 : i32, i32, i32, i32
  }
  func.func @transform_7(%arg0: i32, %arg1: i32) -> (i32, i32, i32, i32) {
    %c0_i32 = arith.constant 0 : i32
    %c0_i32_0 = arith.constant 0 : i32
    %c0_i32_1 = arith.constant 0 : i32
    return %arg0, %c0_i32, %arg1, %c0_i32_0 : i32, i32, i32, i32
  }
}

</mosaic_0001>

<llo_original>
// kernel: tpu_custom_call.1
$region0: #{tpu_custom_call.1}
  #allocation0 [shape = 'u32[]', space=smem, size = 0x4, offset = 0x4, fixed_abs, tag = 'smem constant byte address 0x4 - core index']
  #allocation1 [shape = 'u32[144,128]{1,0:T(1,128)}', space=vmem, size = 0x12000, scoped, tag = 'internal scratch']
  %s0 = inlined_call_operand.hbm [shape: f32[3,16,16], index: 0, kind: input, shape index: {}]
  %s1 = inlined_call_operand.hbm [shape: f32[2,16,16], index: 1, kind: input, shape index: {}]
  %s2 = inlined_call_operand.hbm [shape: f32[2,16,16], index: 2, kind: input, shape index: {}]
  %s3 = inlined_call_operand.vmem [shape: f32[2,9], index: 3, kind: input, shape index: {}]
  %s4 = inlined_call_operand.vmem [shape: f32[2,16], index: 4, kind: input, shape index: {}]
  %s5 = inlined_call_operand.vmem [shape: f32[2,12], index: 5, kind: input, shape index: {}]
  %s6 = inlined_call_operand.hbm [shape: f32[2,1,8,128], index: 6, kind: output, shape index: {0}]
  %s7 = inlined_call_operand.hbm [shape: f32[2,2,16,16], index: 7, kind: output, shape index: {1}]
  %8 = xla_tuple %s6, %s7
  %s9 = sld [smem:[#allocation0]]
  $region89: #{tpu_custom_call.1} parent=0
    _
  %s11 = ssub.s32 1, %s9
  %s12 = scalar_select 0, %s11, %s9
  $region1: #{tpu_custom_call.1} parent=0
    #allocation2 [shape = 'u8[24576]{0}', space=vmem, size = 0x6000, scoped, tag = 'input window, operand 0, single buffered']
    #allocation3 [shape = 's32[2]{0}', space=sflag, size = 0x8, scoped, tag = 'scoped memory for tpu_custom_call.1']
    #allocation4 [shape = 's32[2]{0}', space=sflag, size = 0x8, scoped, tag = 'scoped memory for tpu_custom_call.1']
    #allocation5 [shape = 's32[2]{0}', space=sflag, size = 0x8, scoped, tag = 'scoped memory for tpu_custom_call.1']
    #allocation6 [shape = 'u8[16384]{0}', space=vmem, size = 0x4000, scoped, tag = 'input window, operand 1']
    #allocation7 [shape = 's32[2]{0}', space=sflag, size = 0x8, scoped, tag = 'scoped memory for tpu_custom_call.1']
    #allocation8 [shape = 'u8[16384]{0}', space=vmem, size = 0x4000, scoped, tag = 'input window, operand 2']
    #allocation9 [shape = 'u8[1024]{0}', space=smem, size = 0x400, scoped, tag = 'input window, operand 3, single buffered']
    #allocation10 [shape = 'u8[1024]{0}', space=smem, size = 0x400, scoped, tag = 'input window, operand 4, single buffered']
    #allocation11 [shape = 's32[1]{0}', space=sflag, size = 0x4, scoped, tag = 'scoped memory for tpu_custom_call.1']
    #allocation12 [shape = 'u8[1024]{0}', space=smem, size = 0x400, scoped, tag = 'input window, operand 5, single buffered']
    #allocation13 [shape = 'u8[8192]{0}', space=vmem, size = 0x2000, scoped, tag = 'output window, operand 0']
    #allocation14 [shape = 'u8[32768]{0}', space=vmem, size = 0x8000, scoped, tag = 'output window, operand 1']
    #allocation15 [shape = 's32[2]{0}', space=sflag, size = 0x8, scoped, tag = 'scoped memory for tpu_custom_call.1']
    %13 = vsyncpa [#allocation3], 0
    %14 = vsyncpa [#allocation7], 0
    %s15 = scalar_lea.sflag [#allocation7], 1
    %16 = vsyncpa %s15, 0
    %17 = vsyncpa [#allocation5], 0
    %18 = vsyncpa [#allocation11], 0
    %19 = vsyncpa [#allocation4], 0
    %s20 = scalar_lea.sflag [#allocation4], 1
    %21 = vsyncpa %s20, 0
    %22 = vsyncpa [#allocation15], 0
    %s23 = scalar_lea.sflag [#allocation15], 1
    %24 = vsyncpa %s23, 0
    loop: start=0, step=1, limit=4
    $region2: #{tpu_custom_call.1} parent=1 // loop_pre_header
      _
    $region3: #{tpu_custom_call.1} parent=1 // loop_header
      %s26 = sphi 0, %s30
      %p27 = scmp.ge.s32.totalorder %s26, 4
      %s33 = sphi 0, %s45
      %s34 = sphi 0, %s41
      %s35 = sphi 0, %s33
      %s36 = sphi 0, %s34
      %s37 = sphi 0, %s35
      %s38 = sphi 0, %s36
      %s48 = sphi 0, %s50
      %s51 = sphi 0, %s48
      %s52 = sphi 0, %s51
      %s68 = sphi 0, %s52
      %s76 = sphi 0, %s78
      %s79 = sphi 0, %s76
      %s80 = sphi 0, %s79
      %s96 = sphi 0, %s80
      %s104 = sphi 0, %s106
      %s107 = sphi 0, %s104
      %s108 = sphi 0, %s107
      %s124 = sphi 0, %s108
      %s128 = sphi 0, %s128
      %s130 = sphi 0, %s128
      %s131 = sphi 0, %s130
      %s145 = sphi 0, %s131
      %s149 = sphi 0, %s149
      %s151 = sphi 0, %s149
      %s152 = sphi 0, %s151
      %s166 = sphi 0, %s152
      %s170 = sphi 0, %s170
      %s172 = sphi 0, %s170
      %s173 = sphi 0, %s172
      %s187 = sphi 0, %s173
      %s195 = sphi 0, %s197
      %s198 = sphi 0, %s195
      %s199 = sphi 0, %s198
      %s215 = sphi 0, %s199
      %s223 = sphi 0, %s225
      %s226 = sphi 0, %s223
      %s227 = sphi 0, %s226
      %s243 = sphi 0, %s227
    $region4: #{tpu_custom_call.1} parent=1 // loop_header_branch
      %29 = sbr.rel (%p27) target = $region8
    $region5: #{tpu_custom_call.1} parent=1 // loop_body
      %s31 = ssub.s32 %s26, 1
      %s32 = ssub.s32 %s26, 2
      %s39 = sadd.s32 1, %s34
      %p40 = scmp.ge.s32.totalorder %s39, 1
      %s41 = scalar_select %p40, 0, %s39
      %s42 = sadd.s32 1, %s33
      %s43 = scalar_select %p40, %s42, %s33
      %p44 = scmp.ge.s32.totalorder %s43, 2
      %s45 = scalar_select %p44, 0, %s43
      %s46 = ssub.s32 %s34, %s41
      %p47 = scmp.eq.s32.totalorder %s46, 0
      %s49 = sadd.s32 %s48, 1
      %s50 = scalar_select %p47, %s48, %s49
      %p53 = pneg %p47
      %p54 = scmp.eq.s32.totalorder %s26, 1
      %p55 = por %p53, %p54
      %p56 = scmp.ne.s32.totalorder %s48, %s51
      %p57 = scmp.eq.s32.totalorder %s26, 0
      %p58 = por %p56, %p57
      %p59 = scmp.ne.s32.totalorder %s48, %s51
      %p60 = scmp.eq.s32.totalorder %s31, 1
      %p61 = por %p59, %p60
      %p62 = scmp.ne.s32.totalorder %s51, %s52
      %p63 = scmp.eq.s32.totalorder %s31, 0
      %p64 = por %p62, %p63
      %p65 = scmp.ne.s32.totalorder %s51, %s52
      %p66 = scmp.eq.s32.totalorder %s32, 1
      %p67 = por %p65, %p66
      %p69 = scmp.ne.s32.totalorder %s52, %s68
      %p70 = scmp.eq.s32.totalorder %s32, 0
      %p71 = por %p69, %p70
      %s72 = ssub.s32 %s33, %s45
      %s73 = ssub.s32 %s34, %s41
      %s74 = sor.u32 %s72, %s73
      %p75 = scmp.eq.s32.totalorder %s74, 0
      %s77 = sadd.s32 %s76, 1
      %s78 = scalar_select %p75, %s76, %s77
      %p81 = pneg %p75
      %p82 = scmp.eq.s32.totalorder %s26, 1
      %p83 = por %p81, %p82
      %p84 = scmp.ne.s32.totalorder %s76, %s79
      %p85 = scmp.eq.s32.totalorder %s26, 0
      %p86 = por %p84, %p85
      %p87 = scmp.ne.s32.totalorder %s76, %s79
      %p88 = scmp.eq.s32.totalorder %s31, 1
      %p89 = por %p87, %p88
      %p90 = scmp.ne.s32.totalorder %s79, %s80
      %p91 = scmp.eq.s32.totalorder %s31, 0
      %p92 = por %p90, %p91
      %p93 = scmp.ne.s32.totalorder %s79, %s80
      %p94 = scmp.eq.s32.totalorder %s32, 1
      %p95 = por %p93, %p94
      %p97 = scmp.ne.s32.totalorder %s80, %s96
      %p98 = scmp.eq.s32.totalorder %s32, 0
      %p99 = por %p97, %p98
      %s100 = ssub.s32 %s33, %s45
      %s101 = ssub.s32 %s34, %s41
      %s102 = sor.u32 %s100, %s101
      %p103 = scmp.eq.s32.totalorder %s102, 0
      %s105 = sadd.s32 %s104, 1
      %s106 = scalar_select %p103, %s104, %s105
      %p109 = pneg %p103
      %p110 = scmp.eq.s32.totalorder %s26, 1
      %p111 = por %p109, %p110
      %p112 = scmp.ne.s32.totalorder %s104, %s107
      %p113 = scmp.eq.s32.totalorder %s26, 0
      %p114 = por %p112, %p113
      %p115 = scmp.ne.s32.totalorder %s104, %s107
      %p116 = scmp.eq.s32.totalorder %s31, 1
      %p117 = por %p115, %p116
      %p118 = scmp.ne.s32.totalorder %s107, %s108
      %p119 = scmp.eq.s32.totalorder %s31, 0
      %p120 = por %p118, %p119
      %p121 = scmp.ne.s32.totalorder %s107, %s108
      %p122 = scmp.eq.s32.totalorder %s32, 1
      %p123 = por %p121, %p122
      %p125 = scmp.ne.s32.totalorder %s108, %s124
      %p126 = scmp.eq.s32.totalorder %s32, 0
      %p127 = por %p125, %p126
      %s129 = sadd.s32 %s128, 1
      %p132 = scmp.eq.s32.totalorder %s26, 1
      %p133 = scmp.ne.s32.totalorder %s128, %s130
      %p134 = scmp.eq.s32.totalorder %s26, 0
      %p135 = por %p133, %p134
      %p136 = scmp.ne.s32.totalorder %s128, %s130
      %p137 = scmp.eq.s32.totalorder %s31, 1
      %p138 = por %p136, %p137
      %p139 = scmp.ne.s32.totalorder %s130, %s131
      %p140 = scmp.eq.s32.totalorder %s31, 0
      %p141 = por %p139, %p140
      %p142 = scmp.ne.s32.totalorder %s130, %s131
      %p143 = scmp.eq.s32.totalorder %s32, 1
      %p144 = por %p142, %p143
      %p146 = scmp.ne.s32.totalorder %s131, %s145
      %p147 = scmp.eq.s32.totalorder %s32, 0
      %p148 = por %p146, %p147
      %s150 = sadd.s32 %s149, 1
      %p153 = scmp.eq.s32.totalorder %s26, 1
      %p154 = scmp.ne.s32.totalorder %s149, %s151
      %p155 = scmp.eq.s32.totalorder %s26, 0
      %p156 = por %p154, %p155
      %p157 = scmp.ne.s32.totalorder %s149, %s151
      %p158 = scmp.eq.s32.totalorder %s31, 1
      %p159 = por %p157, %p158
      %p160 = scmp.ne.s32.totalorder %s151, %s152
      %p161 = scmp.eq.s32.totalorder %s31, 0
      %p162 = por %p160, %p161
      %p163 = scmp.ne.s32.totalorder %s151, %s152
      %p164 = scmp.eq.s32.totalorder %s32, 1
      %p165 = por %p163, %p164
      %p167 = scmp.ne.s32.totalorder %s152, %s166
      %p168 = scmp.eq.s32.totalorder %s32, 0
      %p169 = por %p167, %p168
      %s171 = sadd.s32 %s170, 1
      %p174 = scmp.eq.s32.totalorder %s26, 1
      %p175 = scmp.ne.s32.totalorder %s170, %s172
      %p176 = scmp.eq.s32.totalorder %s26, 0
      %p177 = por %p175, %p176
      %p178 = scmp.ne.s32.totalorder %s170, %s172
      %p179 = scmp.eq.s32.totalorder %s31, 1
      %p180 = por %p178, %p179
      %p181 = scmp.ne.s32.totalorder %s172, %s173
      %p182 = scmp.eq.s32.totalorder %s31, 0
      %p183 = por %p181, %p182
      %p184 = scmp.ne.s32.totalorder %s172, %s173
      %p185 = scmp.eq.s32.totalorder %s32, 1
      %p186 = por %p184, %p185
      %p188 = scmp.ne.s32.totalorder %s173, %s187
      %p189 = scmp.eq.s32.totalorder %s32, 0
      %p190 = por %p188, %p189
      %s191 = ssub.s32 %s33, %s45
      %s192 = ssub.s32 %s34, %s41
      %s193 = sor.u32 %s191, %s192
      %p194 = scmp.eq.s32.totalorder %s193, 0
      %s196 = sadd.s32 %s195, 1
      %s197 = scalar_select %p194, %s195, %s196
      %p200 = pneg %p194
      %p201 = scmp.eq.s32.totalorder %s26, 1
      %p202 = por %p200, %p201
      %p203 = scmp.ne.s32.totalorder %s195, %s198
      %p204 = scmp.eq.s32.totalorder %s26, 0
      %p205 = por %p203, %p204
      %p206 = scmp.ne.s32.totalorder %s195, %s198
      %p207 = scmp.eq.s32.totalorder %s31, 1
      %p208 = por %p206, %p207
      %p209 = scmp.ne.s32.totalorder %s198, %s199
      %p210 = scmp.eq.s32.totalorder %s31, 0
      %p211 = por %p209, %p210
      %p212 = scmp.ne.s32.totalorder %s198, %s199
      %p213 = scmp.eq.s32.totalorder %s32, 1
      %p214 = por %p212, %p213
      %p216 = scmp.ne.s32.totalorder %s199, %s215
      %p217 = scmp.eq.s32.totalorder %s32, 0
      %p218 = por %p216, %p217
      %s219 = ssub.s32 %s33, %s45
      %s220 = ssub.s32 %s34, %s41
      %s221 = sor.u32 %s219, %s220
      %p222 = scmp.eq.s32.totalorder %s221, 0
      %s224 = sadd.s32 %s223, 1
      %s225 = scalar_select %p222, %s223, %s224
      %p228 = pneg %p222
      %p229 = scmp.eq.s32.totalorder %s26, 1
      %p230 = por %p228, %p229
      %p231 = scmp.ne.s32.totalorder %s223, %s226
      %p232 = scmp.eq.s32.totalorder %s26, 0
      %p233 = por %p231, %p232
      %p234 = scmp.ne.s32.totalorder %s223, %s226
      %p235 = scmp.eq.s32.totalorder %s31, 1
      %p236 = por %p234, %p235
      %p237 = scmp.ne.s32.totalorder %s226, %s227
      %p238 = scmp.eq.s32.totalorder %s31, 0
      %p239 = por %p237, %p238
      %p240 = scmp.ne.s32.totalorder %s226, %s227
      %p241 = scmp.eq.s32.totalorder %s32, 1
      %p242 = por %p240, %p241
      %p244 = scmp.ne.s32.totalorder %s227, %s243
      %p245 = scmp.eq.s32.totalorder %s32, 0
      %p246 = por %p244, %p245
      %p247 = scmp.le.s32.totalorder 1, %s26
      %p248 = scmp.lt.s32.totalorder %s26, 3
      %p249 = pnand %p247, %p248
      %p250 = pneg %p249
      // Predicated region
      $region9: #{tpu_custom_call.1} parent=5 // pred_check
        _
      $region10: #{tpu_custom_call.1} parent=5 // pred_check_branch
        %252 = sbr.rel (%p249) target = $region12
      $region11: #{tpu_custom_call.1} parent=5 // pred_region
        %s253 = ssub.s32 %s26, 1
        // Predicated region
        $region13: #{tpu_custom_call.1} parent=11 // pred_check
          %p254 = pneg %p64
        $region14: #{tpu_custom_call.1} parent=11 // pred_check_branch
          %256 = sbr.rel (%p254) target = $region16
        $region15: #{tpu_custom_call.1} parent=11 // pred_region
          %s257 = smul.u32 2, %s36
          %s259 = ssub.s32 768, 768
          %260 = vsyncadd [#allocation3], %s259
          %s261 = smul.addr %s257, 128
          %s262 = scalar_lea.hbm %s0, %s261
          %s263 = sshll.u32 [#allocation2], 4
          %s264 = int_to_ptr.vmem [resolvable:$true] %s263
          %269 = dma.hbm_to_vmem [thread:$0]  %s262, 768, %s264, [#allocation3], 128, 128, 8
        $region16: #{tpu_custom_call.1} parent=11 // pred_fallthru
          _
        // Predicated region
        $region17: #{tpu_custom_call.1} parent=11 // pred_check
          %p270 = pneg %p141
        $region18: #{tpu_custom_call.1} parent=11 // pred_check_branch
          %272 = sbr.rel (%p270) target = $region20
        $region19: #{tpu_custom_call.1} parent=11 // pred_region
          %s274 = ssub.s32 32, 32
          %275 = vsyncadd [#allocation5], %s274
          %s277 = sshll.u32 %s3, 4
          %s278 = int_to_ptr.vmem [resolvable:$true] %s277
          %280 = dma.vmem_to_smem %s278, 32, [#allocation9], [#allocation5]
        $region20: #{tpu_custom_call.1} parent=11 // pred_fallthru
          _
        // Predicated region
        $region21: #{tpu_custom_call.1} parent=11 // pred_check
          %p281 = pneg %p162
        $region22: #{tpu_custom_call.1} parent=11 // pred_check_branch
          %283 = sbr.rel (%p281) target = $region24
        $region23: #{tpu_custom_call.1} parent=11 // pred_region
          %s285 = ssub.s32 32, 32
          %286 = vsyncadd [#allocation11], %s285
          %s288 = sshll.u32 %s4, 4
          %s289 = int_to_ptr.vmem [resolvable:$true] %s288
          %291 = dma.vmem_to_smem %s289, 32, [#allocation10], [#allocation11]
        $region24: #{tpu_custom_call.1} parent=11 // pred_fallthru
          _
        // Predicated region
        $region25: #{tpu_custom_call.1} parent=11 // pred_check
          %p292 = pneg %p183
        $region26: #{tpu_custom_call.1} parent=11 // pred_check_branch
          %294 = sbr.rel (%p292) target = $region28
        $region27: #{tpu_custom_call.1} parent=11 // pred_region
          %s296 = ssub.s32 32, 32
          %297 = vsyncadd [#allocation11], %s296
          %s299 = sshll.u32 %s5, 4
          %s300 = int_to_ptr.vmem [resolvable:$true] %s299
          %302 = dma.vmem_to_smem %s300, 32, [#allocation12], [#allocation11]
        $region28: #{tpu_custom_call.1} parent=11 // pred_fallthru
          _
      $region12: #{tpu_custom_call.1} parent=5 // pred_fallthru
        _
      %p303 = scmp.lt.s32.totalorder %s26, 2
      // Predicated region
      $region29: #{tpu_custom_call.1} parent=5 // pred_check
        %p304 = pneg %p303
      $region30: #{tpu_custom_call.1} parent=5 // pred_check_branch
        %306 = sbr.rel (%p304) target = $region32
      $region31: #{tpu_custom_call.1} parent=5 // pred_region
        // Predicated region
        $region33: #{tpu_custom_call.1} parent=31 // pred_check
          %p307 = pneg %p86
        $region34: #{tpu_custom_call.1} parent=31 // pred_check_branch
          %309 = sbr.rel (%p307) target = $region36
        $region35: #{tpu_custom_call.1} parent=31 // pred_region
          %s310 = sand.u32 %s26, 1
          %s311 = scalar_lea.sflag [#allocation7], %s310
          %s312 = sand.u32 %s76, 1
          %s313 = smul.addr %s312, 16
          %s314 = scalar_lea.vmem [#allocation6], %s313
          %s315 = smul.u32 2, %s34
          %s317 = ssub.s32 256, 256
          %318 = vsyncadd %s311, %s317
          %s319 = smul.addr %s33, 2
          %s320 = sadd.s32 %s315, %s319
          %s321 = smul.addr %s320, 128
          %s322 = scalar_lea.hbm %s1, %s321
          %s323 = sshll.u32 %s314, 4
          %s324 = int_to_ptr.vmem [resolvable:$true] %s323
          %329 = dma.hbm_to_vmem [thread:$0]  %s322, 256, %s324, %s311, 128, 128, 8
        $region36: #{tpu_custom_call.1} parent=31 // pred_fallthru
          _
        // Predicated region
        $region37: #{tpu_custom_call.1} parent=31 // pred_check
          %p330 = pneg %p114
        $region38: #{tpu_custom_call.1} parent=31 // pred_check_branch
          %332 = sbr.rel (%p330) target = $region40
        $region39: #{tpu_custom_call.1} parent=31 // pred_region
          %s333 = sand.u32 %s26, 1
          %s334 = scalar_lea.sflag [#allocation7], %s333
          %s335 = sand.u32 %s104, 1
          %s336 = smul.addr %s335, 16
          %s337 = scalar_lea.vmem [#allocation8], %s336
          %s338 = smul.u32 2, %s34
          %s340 = ssub.s32 256, 256
          %341 = vsyncadd %s334, %s340
          %s342 = smul.addr %s33, 2
          %s343 = sadd.s32 %s338, %s342
          %s344 = smul.addr %s343, 128
          %s345 = scalar_lea.hbm %s2, %s344
          %s346 = sshll.u32 %s337, 4
          %s347 = int_to_ptr.vmem [resolvable:$true] %s346
          %352 = dma.hbm_to_vmem [thread:$0]  %s345, 256, %s347, %s334, 128, 128, 8
        $region40: #{tpu_custom_call.1} parent=31 // pred_fallthru
          _
      $region32: #{tpu_custom_call.1} parent=5 // pred_fallthru
        _
      %p353 = scmp.le.s32.totalorder 1, %s26
      %p354 = scmp.lt.s32.totalorder %s26, 3
      %p355 = pnand %p353, %p354
      %p356 = pneg %p355
      // Predicated region
      $region41: #{tpu_custom_call.1} parent=5 // pred_check
        _
      $region42: #{tpu_custom_call.1} parent=5 // pred_check_branch
        %358 = sbr.rel (%p355) target = $region44
      $region43: #{tpu_custom_call.1} parent=5 // pred_region
        %s359 = ssub.s32 %s26, 1
        // Predicated region
        $region45: #{tpu_custom_call.1} parent=43 // pred_check
          %p360 = pneg %p64
        $region46: #{tpu_custom_call.1} parent=43 // pred_check_branch
          %362 = sbr.rel (%p360) target = $region48
        $region47: #{tpu_custom_call.1} parent=43 // pred_region
          %363 = dma.done [#allocation3], 768
        $region48: #{tpu_custom_call.1} parent=43 // pred_fallthru
          _
        %s364 = sand.u32 %s31, 1
        %s365 = scalar_lea.sflag [#allocation7], %s364
        %s366 = sand.u32 %s79, 1
        %s367 = smul.addr %s366, 16
        %s368 = scalar_lea.vmem [#allocation6], %s367
        // Predicated region
        $region49: #{tpu_custom_call.1} parent=43 // pred_check
          %p369 = pneg %p92
        $region50: #{tpu_custom_call.1} parent=43 // pred_check_branch
          %371 = sbr.rel (%p369) target = $region52
        $region51: #{tpu_custom_call.1} parent=43 // pred_region
          %372 = dma.done %s365, 256
        $region52: #{tpu_custom_call.1} parent=43 // pred_fallthru
          _
        %s373 = sand.u32 %s31, 1
        %s374 = scalar_lea.sflag [#allocation7], %s373
        %s375 = sand.u32 %s107, 1
        %s376 = smul.addr %s375, 16
        %s377 = scalar_lea.vmem [#allocation8], %s376
        // Predicated region
        $region53: #{tpu_custom_call.1} parent=43 // pred_check
          %p378 = pneg %p120
        $region54: #{tpu_custom_call.1} parent=43 // pred_check_branch
          %380 = sbr.rel (%p378) target = $region56
        $region55: #{tpu_custom_call.1} parent=43 // pred_region
          %381 = dma.done %s374, 256
        $region56: #{tpu_custom_call.1} parent=43 // pred_fallthru
          _
        // Predicated region
        $region57: #{tpu_custom_call.1} parent=43 // pred_check
          %p382 = pneg %p141
        $region58: #{tpu_custom_call.1} parent=43 // pred_check_branch
          %384 = sbr.rel (%p382) target = $region60
        $region59: #{tpu_custom_call.1} parent=43 // pred_region
          %385 = dma.done [#allocation5], 32
        $region60: #{tpu_custom_call.1} parent=43 // pred_fallthru
          _
        // Predicated region
        $region61: #{tpu_custom_call.1} parent=43 // pred_check
          %p386 = pneg %p162
        $region62: #{tpu_custom_call.1} parent=43 // pred_check_branch
          %388 = sbr.rel (%p386) target = $region64
        $region63: #{tpu_custom_call.1} parent=43 // pred_region
          %389 = dma.done [#allocation11], 32
        $region64: #{tpu_custom_call.1} parent=43 // pred_fallthru
          _
        // Predicated region
        $region65: #{tpu_custom_call.1} parent=43 // pred_check
          %p390 = pneg %p183
        $region66: #{tpu_custom_call.1} parent=43 // pred_check_branch
          %392 = sbr.rel (%p390) target = $region68
        $region67: #{tpu_custom_call.1} parent=43 // pred_region
          %393 = dma.done [#allocation11], 32
        $region68: #{tpu_custom_call.1} parent=43 // pred_fallthru
          _
        %394 = sfence
        %p395 = pneg %p64
        %p396 = pneg %p61
        %s397 = sand.u32 %s31, 1
        %s398 = scalar_lea.sflag [#allocation7], %s397
        %s399 = sand.u32 %s79, 1
        %s400 = smul.addr %s399, 16
        %s401 = scalar_lea.vmem [#allocation6], %s400
        %p402 = pneg %p92
        %p403 = pneg %p89
        %s404 = sand.u32 %s31, 1
        %s405 = scalar_lea.sflag [#allocation7], %s404
        %s406 = sand.u32 %s107, 1
        %s407 = smul.addr %s406, 16
        %s408 = scalar_lea.vmem [#allocation8], %s407
        %p409 = pneg %p120
        %p410 = pneg %p117
        %p411 = pneg %p141
        %p412 = pneg %p138
        %p413 = pneg %p162
        %p414 = pneg %p159
        %p415 = pneg %p183
        %p416 = pneg %p180
        %p417 = pneg %p211
        %p418 = pneg %p208
        %s419 = sand.u32 %s198, 1
        %s420 = scalar_lea.sflag [#allocation4], %s419
        %s421 = sand.u32 %s198, 1
        %s422 = smul.addr %s421, 8
        %s423 = scalar_lea.vmem [#allocation13], %s422
        %p424 = pneg %p239
        %p425 = pneg %p236
        %s426 = sand.u32 %s226, 1
        %s427 = scalar_lea.sflag [#allocation15], %s426
        %s428 = sand.u32 %s226, 1
        %s429 = smul.addr %s428, 32
        %s430 = scalar_lea.vmem [#allocation14], %s429
        %s431 = smul.u32 2, %s36
        %s432 = smul.u32 2, %s36
        %s433 = smul.u32 2, %s36
        %s434 = smul.u32 2, %s36
        %v435 = vld [vmem:[#allocation2] sm:$0xff]
        %v436 = vld [vmem:[#allocation2 + $0x8] sm:$0xff]
        %s437 = scalar_lea.vmem [#allocation2], 16
        %v438 = vld [vmem:[%s437] sm:$0xff]
        %v439 = vld [vmem:[%s437 + $0x8] sm:$0xff]
        %s440 = scalar_lea.vmem [#allocation2], 32
        %v441 = vld [vmem:[%s440] sm:$0xff]
        %v442 = vld [vmem:[%s440 + $0x8] sm:$0xff]
        %s443 = smul.u32 %s35, 128
        %s444 = sld [smem:[#allocation9 + %s443]]
        %v445 = vstv %s444
        %v446 = vmul.f32 %v445, %v435
        %v447 = vmul.f32 %v445, %v436
        %s448 = sadd.s32 %s443, 1
        %s449 = sld [smem:[#allocation9 + %s448]]
        %v450 = vstv %s449
        %v451 = vmul.f32 %v450, %v438
        %v452 = vmul.f32 %v450, %v439
        %v453 = vadd.f32 %v446, %v451
        %v454 = vadd.f32 %v447, %v452
        %s455 = sadd.s32 %s443, 2
        %s456 = sld [smem:[#allocation9 + %s455]]
        %v457 = vstv %s456
        %v458 = vmul.f32 %v457, %v441
        %v459 = vmul.f32 %v457, %v442
        %v460 = vadd.f32 %v453, %v458
        %v461 = vadd.f32 %v454, %v459
        %s462 = sadd.s32 %s443, 3
        %s463 = sld [smem:[#allocation9 + %s462]]
        %v464 = vstv %s463
        %v465 = vmul.f32 %v464, %v435
        %v466 = vmul.f32 %v464, %v436
        %s467 = sadd.s32 %s443, 4
        %s468 = sld [smem:[#allocation9 + %s467]]
        %v469 = vstv %s468
        %v470 = vmul.f32 %v469, %v438
        %v471 = vmul.f32 %v469, %v439
        %v472 = vadd.f32 %v465, %v470
        %v473 = vadd.f32 %v466, %v471
        %s474 = sadd.s32 %s443, 5
        %s475 = sld [smem:[#allocation9 + %s474]]
        %v476 = vstv %s475
        %v477 = vmul.f32 %v476, %v441
        %v478 = vmul.f32 %v476, %v442
        %v479 = vadd.f32 %v472, %v477
        %v480 = vadd.f32 %v473, %v478
        %s481 = sadd.s32 %s443, 6
        %s482 = sld [smem:[#allocation9 + %s481]]
        %v483 = vstv %s482
        %v484 = vmul.f32 %v483, %v435
        %v485 = vmul.f32 %v483, %v436
        %s486 = sadd.s32 %s443, 7
        %s487 = sld [smem:[#allocation9 + %s486]]
        %v488 = vstv %s487
        %v489 = vmul.f32 %v488, %v438
        %v490 = vmul.f32 %v488, %v439
        %v491 = vadd.f32 %v484, %v489
        %v492 = vadd.f32 %v485, %v490
        %s493 = sadd.s32 %s443, 8
        %s494 = sld [smem:[#allocation9 + %s493]]
        %v495 = vstv %s494
        %v496 = vmul.f32 %v495, %v441
        %v497 = vmul.f32 %v495, %v442
        %v498 = vadd.f32 %v491, %v496
        %v499 = vadd.f32 %v492, %v497
        %v500 = vld [vmem:[%s368] sm:$0xff]
        %v501 = vld [vmem:[%s368 + $0x8] sm:$0xff]
        %v502 = vld [vmem:[%s377] sm:$0xff]
        %v503 = vld [vmem:[%s377 + $0x8] sm:$0xff]
        %v504 = vmul.f32 %v500, %v460
        %v505 = vmul.f32 %v501, %v461
        %v506 = vmul.f32 %v500, %v479
        %v507 = vmul.f32 %v501, %v480
        %v508 = vmul.f32 %v500, %v498
        %v509 = vmul.f32 %v501, %v499
        %v510 = vmul.f32 %v502, %v460
        %v511 = vmul.f32 %v503, %v461
        %v512 = vmul.f32 %v502, %v479
        %v513 = vmul.f32 %v503, %v480
        %v514 = vmul.f32 %v502, %v498
        %v515 = vmul.f32 %v503, %v499
        %s516 = sld [smem:[#allocation10 + %s443]]
        %v517 = vstv %s516
        %v518 = vmul.f32 %v517, %v504
        %v519 = vmul.f32 %v517, %v505
        %s520 = sld [smem:[#allocation10 + %s448]]
        %v521 = vstv %s520
        %v522 = vmul.f32 %v521, %v506
        %v523 = vmul.f32 %v521, %v507
        %v524 = vadd.f32 %v518, %v522
        %v525 = vadd.f32 %v519, %v523
        %s526 = sld [smem:[#allocation10 + %s455]]
        %v527 = vstv %s526
        %v528 = vmul.f32 %v527, %v508
        %v529 = vmul.f32 %v527, %v509
        %v530 = vadd.f32 %v524, %v528
        %v531 = vadd.f32 %v525, %v529
        %s532 = sld [smem:[#allocation10 + %s462]]
        %v533 = vstv %s532
        %v534 = vadd.f32 %v530, %v533
        %v535 = vadd.f32 %v531, %v533
        %v536 = vsub.f32 %v510, %v534
        %v537 = vsub.f32 %v511, %v535
        %v538 = vand.u32 2147483647, %v536
        %v539 = vand.u32 2147483647, %v537
        %v540 = vadd.f32 %v538, 0.0
        %v541 = vadd.f32 %v539, 0.0
        %s542 = sld [smem:[#allocation10 + %s467]]
        %v543 = vstv %s542
        %v544 = vmul.f32 %v543, %v504
        %v545 = vmul.f32 %v543, %v505
        %s546 = sld [smem:[#allocation10 + %s474]]
        %v547 = vstv %s546
        %v548 = vmul.f32 %v547, %v506
        %v549 = vmul.f32 %v547, %v507
        %v550 = vadd.f32 %v544, %v548
        %v551 = vadd.f32 %v545, %v549
        %s552 = sld [smem:[#allocation10 + %s481]]
        %v553 = vstv %s552
        %v554 = vmul.f32 %v553, %v508
        %v555 = vmul.f32 %v553, %v509
        %v556 = vadd.f32 %v550, %v554
        %v557 = vadd.f32 %v551, %v555
        %s558 = sld [smem:[#allocation10 + %s486]]
        %v559 = vstv %s558
        %v560 = vadd.f32 %v556, %v559
        %v561 = vadd.f32 %v557, %v559
        %v562 = vsub.f32 %v512, %v560
        %v563 = vsub.f32 %v513, %v561
        %v564 = vand.u32 2147483647, %v562
        %v565 = vand.u32 2147483647, %v563
        %v566 = vadd.f32 %v540, %v564
        %v567 = vadd.f32 %v541, %v565
        %s568 = sld [smem:[#allocation10 + %s493]]
        %v569 = vstv %s568
        %v570 = vmul.f32 %v569, %v504
        %v571 = vmul.f32 %v569, %v505
        %s572 = sadd.s32 %s443, 9
        %s573 = sld [smem:[#allocation10 + %s572]]
        %v574 = vstv %s573
        %v575 = vmul.f32 %v574, %v506
        %v576 = vmul.f32 %v574, %v507
        %v577 = vadd.f32 %v570, %v575
        %v578 = vadd.f32 %v571, %v576
        %s579 = sadd.s32 %s443, 10
        %s580 = sld [smem:[#allocation10 + %s579]]
        %v581 = vstv %s580
        %v582 = vmul.f32 %v581, %v508
        %v583 = vmul.f32 %v581, %v509
        %v584 = vadd.f32 %v577, %v582
        %v585 = vadd.f32 %v578, %v583
        %s586 = sadd.s32 %s443, 11
        %s587 = sld [smem:[#allocation10 + %s586]]
        %v588 = vstv %s587
        %v589 = vadd.f32 %v584, %v588
        %v590 = vadd.f32 %v585, %v588
        %v591 = vsub.f32 %v514, %v589
        %v592 = vsub.f32 %v515, %v590
        %v593 = vand.u32 2147483647, %v591
        %v594 = vand.u32 2147483647, %v592
        %v595 = vadd.f32 %v566, %v593
        %v596 = vadd.f32 %v567, %v594
        %vm597 = vcmask 130048
        %v598 = vsel %vm597, %v595, 0.0
        %v599 = vsel %vm597, %v596, 0.0
        %v600 = vadd.f32 %v598, %v599
        %601 = vadd.xlane.f32.xlu0 %v600
        %v602 = vpop.xlane.xlu0 %601
        %v603 = vrot.slane %v602, 4
        %v604 = vadd.f32 %v602, %v603
        %v605 = vrot.slane %v604, 2
        %v606 = vadd.f32 %v604, %v605
        %v607 = vrot.slane %v606, 1
        %v608 = vadd.f32 %v606, %v607
        %s609 = vtos %v608
        %v610 = vstv %s609
        %611 = vst [vmem:[%s423] sm:$0xff] %v610
        %s612 = sld [smem:[#allocation12 + %s443]]
        %v613 = vstv %s612
        %v614 = vmul.f32 %v613, %v504
        %v615 = vmul.f32 %v613, %v505
        %s616 = sld [smem:[#allocation12 + %s448]]
        %v617 = vstv %s616
        %v618 = vmul.f32 %v617, %v506
        %v619 = vmul.f32 %v617, %v507
        %v620 = vadd.f32 %v614, %v618
        %v621 = vadd.f32 %v615, %v619
        %s622 = sld [smem:[#allocation12 + %s455]]
        %v623 = vstv %s622
        %v624 = vmul.f32 %v623, %v508
        %v625 = vmul.f32 %v623, %v509
        %v626 = vadd.f32 %v620, %v624
        %v627 = vadd.f32 %v621, %v625
        %s628 = sld [smem:[#allocation12 + %s462]]
        %v629 = vstv %s628
        %v630 = vadd.f32 %v626, %v629
        %v631 = vadd.f32 %v627, %v629
        %s632 = sld [smem:[#allocation12 + %s467]]
        %v633 = vstv %s632
        %v634 = vmul.f32 %v633, %v504
        %v635 = vmul.f32 %v633, %v505
        %s636 = sld [smem:[#allocation12 + %s474]]
        %v637 = vstv %s636
        %v638 = vmul.f32 %v637, %v506
        %v639 = vmul.f32 %v637, %v507
        %v640 = vadd.f32 %v634, %v638
        %v641 = vadd.f32 %v635, %v639
        %s642 = sld [smem:[#allocation12 + %s481]]
        %v643 = vstv %s642
        %v644 = vmul.f32 %v643, %v508
        %v645 = vmul.f32 %v643, %v509
        %v646 = vadd.f32 %v640, %v644
        %v647 = vadd.f32 %v641, %v645
        %s648 = sld [smem:[#allocation12 + %s486]]
        %v649 = vstv %s648
        %v650 = vadd.f32 %v646, %v649
        %v651 = vadd.f32 %v647, %v649
        %s652 = sld [smem:[#allocation12 + %s493]]
        %v653 = vstv %s652
        %v654 = vmul.f32 %v653, %v504
        %v655 = vmul.f32 %v653, %v505
        %s656 = sld [smem:[#allocation12 + %s572]]
        %v657 = vstv %s656
        %v658 = vmul.f32 %v657, %v506
        %v659 = vmul.f32 %v657, %v507
        %v660 = vadd.f32 %v654, %v658
        %v661 = vadd.f32 %v655, %v659
        %s662 = sld [smem:[#allocation12 + %s579]]
        %v663 = vstv %s662
        %v664 = vmul.f32 %v663, %v508
        %v665 = vmul.f32 %v663, %v509
        %v666 = vadd.f32 %v660, %v664
        %v667 = vadd.f32 %v661, %v665
        %s668 = sld [smem:[#allocation12 + %s586]]
        %v669 = vstv %s668
        %v670 = vadd.f32 %v666, %v669
        %v671 = vadd.f32 %v667, %v669
        %v672 = vadd.f32 %v670, 1e-06
        %v673 = vadd.f32 %v671, 1e-06
        %v674 = vrcp.pop %v672
        %v675 = vmul.f32 1.0, %v674
        %v676 = vrcp.pop %v673
        %v677 = vmul.f32 1.0, %v676
        %v678 = vmul.f32 %v630, %v675
        %v679 = vmul.f32 %v631, %v677
        %680 = vst.msk [vmem:[%s430] sm:$0xff] %vm597, %v678
        %681 = vst.msk [vmem:[%s430 + $0x8] sm:$0xff] %vm597, %v679
        %v682 = vmul.f32 %v650, %v675
        %v683 = vmul.f32 %v651, %v677
        %s684 = scalar_lea.vmem %s430, 16 [#allocation14]
        %685 = vst.msk [vmem:[%s684] sm:$0xff] %vm597, %v682
        %686 = vst.msk [vmem:[%s684 + $0x8] sm:$0xff] %vm597, %v683
        %s687 = sand.u32 %s198, 1
        %s688 = scalar_lea.sflag [#allocation4], %s687
        %s689 = sand.u32 %s198, 1
        %s690 = smul.addr %s689, 8
        %s691 = scalar_lea.vmem [#allocation13], %s690
        %s692 = sand.u32 %s226, 1
        %s693 = scalar_lea.sflag [#allocation15], %s692
        %s694 = sand.u32 %s226, 1
        %s695 = smul.addr %s694, 32
        %s696 = scalar_lea.vmem [#allocation14], %s695
        // Predicated region
        $region69: #{tpu_custom_call.1} parent=43 // pred_check
          %p697 = pneg %p208
        $region70: #{tpu_custom_call.1} parent=43 // pred_check_branch
          %699 = sbr.rel (%p697) target = $region72
        $region71: #{tpu_custom_call.1} parent=43 // pred_region
          %s701 = ssub.s32 128, 128
          %702 = vsyncadd %s688, %s701
          %s703 = sadd.s32 %s36, %s35
          %s704 = smul.addr %s703, 128
          %s705 = scalar_lea.hbm %s6, %s704
          %s707 = sshll.u32 %s691, 4
          %s708 = int_to_ptr.vmem [resolvable:$true] %s707
          %710 = dma.vmem_to_hbm [thread:$0]  %s708, 128, %s705, %s688
        $region72: #{tpu_custom_call.1} parent=43 // pred_fallthru
          _
        // Predicated region
        $region73: #{tpu_custom_call.1} parent=43 // pred_check
          %p711 = pneg %p236
        $region74: #{tpu_custom_call.1} parent=43 // pred_check_branch
          %713 = sbr.rel (%p711) target = $region76
        $region75: #{tpu_custom_call.1} parent=43 // pred_region
          %s714 = smul.u32 2, %s36
          %s716 = ssub.s32 512, 512
          %717 = vsyncadd %s693, %s716
          %s718 = smul.addr %s35, 4
          %s719 = sadd.s32 %s714, %s718
          %s720 = smul.addr %s719, 128
          %s721 = scalar_lea.hbm %s7, %s720
          %s722 = sshll.u32 %s696, 4
          %s723 = int_to_ptr.vmem [resolvable:$true] %s722
          %728 = dma.vmem_to_hbm [thread:$0]  %s723, 512, %s721, %s693, 128, 128, 8
        $region76: #{tpu_custom_call.1} parent=43 // pred_fallthru
          _
      $region44: #{tpu_custom_call.1} parent=5 // pred_fallthru
        _
      %p729 = scmp.le.s32.totalorder 2, %s26
      // Predicated region
      $region77: #{tpu_custom_call.1} parent=5 // pred_check
        %p730 = pneg %p729
      $region78: #{tpu_custom_call.1} parent=5 // pred_check_branch
        %732 = sbr.rel (%p730) target = $region80
      $region79: #{tpu_custom_call.1} parent=5 // pred_region
        %s733 = ssub.s32 %s26, 2
        // Predicated region
        $region81: #{tpu_custom_call.1} parent=79 // pred_check
          %p734 = pneg %p214
        $region82: #{tpu_custom_call.1} parent=79 // pred_check_branch
          %736 = sbr.rel (%p734) target = $region84
        $region83: #{tpu_custom_call.1} parent=79 // pred_region
          %s737 = sand.u32 %s199, 1
          %s738 = scalar_lea.sflag [#allocation4], %s737
          %s739 = sand.u32 %s199, 1
          %s740 = smul.addr %s739, 8
          %s741 = scalar_lea.vmem [#allocation13], %s740
          %742 = dma.done %s738, 128
        $region84: #{tpu_custom_call.1} parent=79 // pred_fallthru
          _
        // Predicated region
        $region85: #{tpu_custom_call.1} parent=79 // pred_check
          %p743 = pneg %p242
        $region86: #{tpu_custom_call.1} parent=79 // pred_check_branch
          %745 = sbr.rel (%p743) target = $region88
        $region87: #{tpu_custom_call.1} parent=79 // pred_region
          %s746 = sand.u32 %s227, 1
          %s747 = scalar_lea.sflag [#allocation15], %s746
          %s748 = sand.u32 %s227, 1
          %s749 = smul.addr %s748, 32
          %s750 = scalar_lea.vmem [#allocation14], %s749
          %751 = dma.done %s747, 512
        $region88: #{tpu_custom_call.1} parent=79 // pred_fallthru
          _
      $region80: #{tpu_custom_call.1} parent=5 // pred_fallthru
        _
    $region6: #{tpu_custom_call.1} parent=1 // loop_footer
      %s30 = sadd.s32 1, %s26
    $region7: #{tpu_custom_call.1} parent=1 // loop_footer_branch
      %25 = sbr.rel target = $region3
    $region8: #{tpu_custom_call.1} parent=1 // loop_exit
      _
    %752 = vsyncpa [#allocation3], 1
    %s753 = scalar_lea.sflag [#allocation3], 1
    %754 = vsyncpa %s753, 1
    %755 = vsyncpa [#allocation7], 1
    %s756 = scalar_lea.sflag [#allocation7], 1
    %757 = vsyncpa %s756, 1
    %758 = vsyncpa [#allocation4], 1
    %s759 = scalar_lea.sflag [#allocation4], 1
    %760 = vsyncpa %s759, 1
    %761 = vsyncpa [#allocation15], 1
    %s762 = scalar_lea.sflag [#allocation15], 1
    %763 = vsyncpa %s762, 1
    %764 = vsyncpa [#allocation5], 1
    %s765 = scalar_lea.sflag [#allocation5], 1
    %766 = vsyncpa %s765, 1
    %767 = vsyncpa [#allocation11], 1

</llo_original>
